<compile_context>
chip_gen: v7x
topology: tpu7x:2x2x1
jax: 0.10.0
libtpu: 0.0.40
codegen_flags: <defaults>
</compile_context>

<pallas_src>
import functools

import jax
import jax.numpy as jnp
from jax.experimental import pallas as pl
from jax.experimental.pallas import tpu as pltpu


# ----------------------------- Pallas kernel -----------------------------

def _apply_activation(y, activation):
    if activation == 'relu':
        return jnp.maximum(y, 0.0)
    if activation == 'sigmoid':
        return jax.nn.sigmoid(y)
    if activation == 'tanh':
        return jnp.tanh(y)
    return y  # 'identity'


def _conv_bn_act_kernel(x_ref, xh_ref, w_ref, sc_ref, bs_ref, o_ref, sum_ref, ssq_ref, *,
                        groups, ksize, dilation, t_tile, out_len, eps, activation,
                        do_bn, nt_count, fold_taps):
    """Grouped 1-D conv (+ training-mode BN) + activation on one [C, T_tile] tile.

    x_ref : [1, C_in, t_tile]   bf16  main tile of the padded, channel-first input
    xh_ref: [1, C_in, HALO]     bf16  right halo of the same padded input
    w_ref : [C_out, K*in_g]     bf16  generated conv weights, taps stacked on the contraction dim
    sc_ref: [C_out, 1]          f32   generated BN gamma (ones if batch_norm=False)
    bs_ref: [C_out, 1]          f32   generated BN beta (or conv bias if batch_norm=False)
    o_ref : [1, C_out, t_tile]        output tile (partial last tile is masked by Pallas)
    sum_ref/ssq_ref: [C_out, 1] f32   per-channel running sum / sum-of-squares (BN stats)
    """
    C_in = x_ref.shape[1]
    C_out = o_ref.shape[1]
    in_g = C_in // groups
    out_g = C_out // groups

    if do_bn:
        p = pl.program_id(0)     # 0: accumulate statistics, 1: normalize + store
        n = pl.program_id(1)
        t = pl.program_id(2)

        @pl.when((p == 0) & (n == 0) & (t == 0))
        def _init():
            sum_ref[...] = jnp.zeros_like(sum_ref)
            ssq_ref[...] = jnp.zeros_like(ssq_ref)

        # columns of this tile that are real outputs (the last tile may be partial)
        col = jax.lax.broadcasted_iota(jnp.int32, (1, t_tile), 1)
        valid = col < (out_len - t * t_tile)
        inv_count = 1.0 / float(nt_count)

    # tile + right halo window: [C_in, t_tile + HALO] (bf16, stays narrow in VMEM)
    xw = jnp.concatenate([x_ref[0], xh_ref[0]], axis=-1)

    for g in range(groups):                        # static python loop; groups is small
        xg = xw[g * in_g:(g + 1) * in_g, :]        # [in_g, t_tile + HALO]
        wg = w_ref[g * out_g:(g + 1) * out_g, :]   # [out_g, K*in_g]

        if fold_taps:
            # one MXU matmul with contraction depth K*in_g
            taps = [xg[:, k * dilation:k * dilation + t_tile] for k in range(ksize)]
            xstk = taps[0] if ksize == 1 else jnp.concatenate(taps, axis=0)
            acc = jnp.dot(wg, xstk, preferred_element_type=jnp.float32)   # [out_g, t_tile] f32
        else:
            # large in_g: per-tap dots already have deep contraction; avoid the big stack copy
            acc = jnp.zeros((out_g, t_tile), jnp.float32)
            for k in range(ksize):
                acc = acc + jnp.dot(wg[:, k * in_g:(k + 1) * in_g],
                                    xg[:, k * dilation:k * dilation + t_tile],
                                    preferred_element_type=jnp.float32)

        lo, hi = g * out_g, (g + 1) * out_g

        if do_bn:
            @pl.when(p == 0)
            def _accumulate(acc=acc, lo=lo, hi=hi):
                am = jnp.where(valid, acc, 0.0)
                sum_ref[lo:hi, :] = sum_ref[lo:hi, :] + jnp.sum(am, axis=1, keepdims=True)
                ssq_ref[lo:hi, :] = ssq_ref[lo:hi, :] + jnp.sum(am * am, axis=1, keepdims=True)

            @pl.when(p == 1)
            def _normalize(acc=acc, lo=lo, hi=hi):
                mean = sum_ref[lo:hi, :] * inv_count
                var = ssq_ref[lo:hi, :] * inv_count - mean * mean
                y = (acc - mean) * jax.lax.rsqrt(var + eps)
                y = y * sc_ref[lo:hi, :] + bs_ref[lo:hi, :]
                y = _apply_activation(y, activation)
                o_ref[0, lo:hi, :] = y.astype(o_ref.dtype)
        else:
            y = acc + bs_ref[lo:hi, :]              # conv bias (bias = not batch_norm)
            y = _apply_activation(y, activation)
            o_ref[0, lo:hi, :] = y.astype(o_ref.dtype)


# ------------------------------ module port -------------------------------

def _linear_params(key, fan_in, fan_out, dtype=jnp.float32):
    # torch.nn.Linear default init: U(-1/sqrt(fan_in), 1/sqrt(fan_in))
    kw, kb = jax.random.split(key)
    bound = 1.0 / (fan_in ** 0.5)
    w = jax.random.uniform(kw, (fan_in, fan_out), dtype, -bound, bound)
    b = jax.random.uniform(kb, (fan_out,), dtype, -bound, bound)
    return w, b


class ConvBlockGeneratedPallas:
    """JAX/Pallas port of ConvBlockGenerated (Conv1dGenerated + BatchNorm1dGenerated)."""

    def __init__(self, key, embedding_dim, bottleneck_dim, input_channels, output_channels,
                 kernel, dropout=0.0, activation='identity', dilation=1, groups=1,
                 batch_norm=True):
        assert input_channels % groups == 0 and output_channels % groups == 0
        self.embedding_dim = embedding_dim
        self.bottleneck_dim = bottleneck_dim
        self.input_channels = input_channels
        self.output_channels = output_channels
        self.K = kernel
        self.dilation = dilation
        self.groups = groups
        self.batch_norm = batch_norm
        self.activation = activation
        # TODO(synk): dropout > 0 in training mode needs RNG; default 0.0 is an exact no-op.
        self.dropout = dropout
        self.eps = 1e-8                     # BatchNorm1dGenerated default eps
        self.in_g = input_channels // groups
        self.out_g = output_channels // groups

        k1, k2, k3, k4, k5 = jax.random.split(key, 5)
        # Conv1dGenerated hypernet
        self.Wc_b, self.bc_b = _linear_params(k1, embedding_dim, bottleneck_dim)
        self.Wc_k, self.bc_k = _linear_params(
            k2, bottleneck_dim, self.out_g * self.in_g * kernel)
        if not batch_norm:
            self.Wc_bias, self.bc_bias = _linear_params(k3, bottleneck_dim, self.out_g)
        # BatchNorm1dGenerated hypernet
        if batch_norm:
            self.Wb_b, self.bb_b = _linear_params(k4, embedding_dim, bottleneck_dim)
            self.Wb_a, self.bb_a = _linear_params(k5, bottleneck_dim, 2 * self.out_g)

    # --- hypernetwork weight generation (tiny matmuls; plain-JAX glue) ---
    def generate_params(self, e):
        eb = e @ self.Wc_b + self.bc_b                                   # [g, bottleneck]
        kflat = eb @ self.Wc_k + self.bc_k                               # [g, out_g*in_g*K]
        # matches torch: kernel = self._kernel(e).view(out_channels, in_channels//groups, K)
        W_oik = kflat.reshape(self.output_channels, self.in_g, self.K)   # [C_out, in_g, K]
        # MXU-friendly stacked layout: row co, column k*in_g + ci  -> [C_out, K*in_g], bf16
        W_st = jnp.transpose(W_oik, (0, 2, 1)).reshape(
            self.output_channels, self.K * self.in_g).astype(jnp.bfloat16)
        if self.batch_norm:
            eb2 = e @ self.Wb_b + self.bb_b
            aff = eb2 @ self.Wb_a + self.bb_a                            # [g, 2*out_g]
            scale = aff[:, :self.out_g].reshape(self.output_channels, 1)
            bias = aff[:, self.out_g:].reshape(self.output_channels, 1)
        else:
            scale = jnp.ones((self.output_channels, 1), jnp.float32)
            bias = (eb @ self.Wc_bias + self.bc_bias).reshape(self.output_channels, 1)
        return W_oik, W_st, scale, bias

    def __call__(self, inputs):
        e, x = inputs                                   # e: [groups, emb], x: [N, C_in, T]
        assert e.shape[0] == self.groups
        _, W_st, scale, bias = self.generate_params(e)

        N, C_in, T = x.shape
        K, d, G = self.K, self.dilation, self.groups
        C_out = self.output_channels
        in_g = self.in_g

        # 'same' padding exactly as ConstantPad1d in the torch module
        p = (K - 1) * d // 2
        pad_l, pad_r = (p, p) if K % 2 != 0 else (p, p + 1)
        halo = (K - 1) * d
        out_len = T + pad_l + pad_r - halo

        # --- tiling parameters (lane axis = time) ---
        HALO = 128 * max(1, pl.cdiv(halo, 128))           # halo block, multiple of 128 lanes
        t_tile = min(512, 128 * pl.cdiv(out_len, 128))    # 128..512 output columns per tile
        t_tile = HALO * pl.cdiv(t_tile, HALO)             # must be a multiple of HALO
        nT = pl.cdiv(out_len, t_tile)
        Tp = nT * t_tile + HALO                           # padded time length seen by the kernel

        # single fused pad + bf16 cast (the only activation-sized glue op left)
        xp = jnp.pad(x.astype(jnp.bfloat16), ((0, 0), (0, 0), (pad_l, Tp - T - pad_l)))

        kernel_fn = functools.partial(
            _conv_bn_act_kernel, groups=G, ksize=K, dilation=d, t_tile=t_tile,
            out_len=out_len, eps=self.eps, activation=self.activation,
            do_bn=self.batch_norm, nt_count=N * out_len,
            fold_taps=(K * in_g) <= 256)

        Kin = K * in_g
        halo_blocks = t_tile // HALO
        if self.batch_norm:
            # pass axis (0: accumulate stats, 1: normalize+store) is sequential and the BN
            # reduction couples every (N, T) tile -> all axes "arbitrary".
            grid = (2, N, nT)
            x_map = lambda pp, n, t: (n, 0, t)
            h_map = lambda pp, n, t: (n, 0, (t + 1) * halo_blocks)
            c_map = lambda pp, n, t: (0, 0)
            # pass 0 writes nothing: park the output on block (0,0,0) -> no garbage write-back
            o_map = lambda pp, n, t: (n * pp, 0, t * pp)
            sem = ("arbitrary", "arbitrary", "arbitrary")
        else:
            grid = (N, nT)
            x_map = lambda n, t: (n, 0, t)
            h_map = lambda n, t: (n, 0, (t + 1) * halo_blocks)
            c_map = lambda n, t: (0, 0)
            o_map = lambda n, t: (n, 0, t)
            sem = ("parallel", "parallel")

        y = pl.pallas_call(
            kernel_fn,
            out_shape=jax.ShapeDtypeStruct((N, C_out, out_len), x.dtype),
            grid=grid,
            in_specs=[
                pl.BlockSpec((1, C_in, t_tile), x_map),   # main input tile
                pl.BlockSpec((1, C_in, HALO), h_map),     # right halo of the same array
                pl.BlockSpec((C_out, Kin), c_map),        # generated conv weights (resident)
                pl.BlockSpec((C_out, 1), c_map),          # BN gamma / ones
                pl.BlockSpec((C_out, 1), c_map),          # BN beta  / conv bias
            ],
            out_specs=pl.BlockSpec((1, C_out, t_tile), o_map),
            scratch_shapes=[pltpu.VMEM((C_out, 1), jnp.float32),
                            pltpu.VMEM((C_out, 1), jnp.float32)],
            compiler_params=pltpu.CompilerParams(
                dimension_semantics=sem,
                vmem_limit_bytes=32 * 1024 * 1024),
        )(xp, xp, W_st, scale, bias)

        return e, y                                      # torch layout [N, C_out, out_len]


# ------------------------------ pure-JAX reference ------------------------------

def torch_reference(mod, e, x):
    W_oik, _, scale, bias = mod.generate_params(e)
    p = (mod.K - 1) * mod.dilation // 2
    pad_l, pad_r = (p, p) if mod.K % 2 != 0 else (p, p + 1)
    xp = jnp.pad(x, ((0, 0), (0, 0), (pad_l, pad_r))).astype(jnp.bfloat16)
    y = jax.lax.conv_general_dilated(
        xp, W_oik.astype(jnp.bfloat16), window_strides=(1,), padding='VALID',
        rhs_dilation=(mod.dilation,),
        dimension_numbers=('NCH', 'OIH', 'NCH'),
        feature_group_count=mod.groups,
        preferred_element_type=jnp.float32)
    sc = scale.reshape(-1)[None, :, None]
    bs = bias.reshape(-1)[None, :, None]
    if mod.batch_norm:
        mean = jnp.mean(y, axis=(0, 2), keepdims=True)
        var = jnp.mean((y - mean) ** 2, axis=(0, 2), keepdims=True)
        y = (y - mean) * jax.lax.rsqrt(var + mod.eps) * sc + bs
    else:
        y = y + bs
    return _apply_activation(y, mod.activation)


if __name__ == "__main__":
    key = jax.random.PRNGKey(0)
    k1, k2, k3, k4, k5, k6 = jax.random.split(key, 6)

    # Config 1: grouped conv + batch-norm + relu (odd kernel)
    mod1 = ConvBlockGeneratedPallas(
        k1, embedding_dim=8, bottleneck_dim=4, input_channels=8, output_channels=16,
        kernel=5, dropout=0.0, activation='relu', dilation=1, groups=2, batch_norm=True)
    e1 = jax.random.normal(k2, (2, 8), jnp.float32)
    x1 = jax.random.normal(k3, (2, 8, 16), jnp.float32)
    _, y1 = mod1((e1, x1))
    y1 = jax.block_until_ready(y1)
    r1 = torch_reference(mod1, e1, x1)
    assert y1.shape == r1.shape == (2, 16, 16)
    assert jnp.allclose(y1, r1, atol=3e-2, rtol=3e-2), \
        f"config1 max err {jnp.max(jnp.abs(y1 - r1))}"

    # Config 2: no batch-norm (conv bias), tanh, even kernel with dilation, groups=1
    mod2 = ConvBlockGeneratedPallas(
        k4, embedding_dim=8, bottleneck_dim=4, input_channels=8, output_channels=16,
        kernel=4, dropout=0.0, activation='tanh', dilation=2, groups=1, batch_norm=False)
    e2 = jax.random.normal(k5, (1, 8), jnp.float32)
    x2 = jax.random.normal(k6, (2, 8, 40), jnp.float32)
    _, y2 = mod2((e2, x2))
    y2 = jax.block_until_ready(y2)
    r2 = torch_reference(mod2, e2, x2)
    assert y2.shape == r2.shape
    assert jnp.allclose(y2, r2, atol=3e-2, rtol=3e-2), \
        f"config2 max err {jnp.max(jnp.abs(y2 - r2))}"

    print("KERNEL_OK")
</pallas_src>

<mosaic_0001>
module attributes {stable_mosaic.version = 11 : i64} {
  func.func @_conv_bn_act_kernel(%arg0: i32, %arg1: i32, %arg2: i32, %arg3: memref<1x8x128xbf16, #tpu.memory_space<vmem>>, %arg4: memref<1x8x128xbf16, #tpu.memory_space<vmem>>, %arg5: memref<16x20xbf16, #tpu.memory_space<vmem>>, %arg6: memref<16x1xf32, #tpu.memory_space<vmem>>, %arg7: memref<16x1xf32, #tpu.memory_space<vmem>>, %arg8: memref<1x16x128xf32, #tpu.memory_space<vmem>>, %arg9: memref<16x1xf32, #tpu.memory_space<vmem>>, %arg10: memref<16x1xf32, #tpu.memory_space<vmem>>) attributes {dimension_semantics = [#tpu.dimension_semantics<arbitrary>, #tpu.dimension_semantics<arbitrary>, #tpu.dimension_semantics<arbitrary>], iteration_bounds = array<i64: 2, 2, 1>, scalar_prefetch = 0 : i64, scratch_operands = 2 : i64, tpu.core_type = #tpu.core_type<tc>, window_params = [{transform_indices = @transform_0, window_bounds = array<i64: 1, 8, 128>}, {transform_indices = @transform_1, window_bounds = array<i64: 1, 8, 128>}, {pipeline_mode = #tpu.pipeline_mode<synchronous>, transform_indices = @transform_2, window_bounds = array<i64: 16, 20>}, {pipeline_mode = #tpu.pipeline_mode<synchronous>, transform_indices = @transform_3, window_bounds = array<i64: 16, 1>}, {pipeline_mode = #tpu.pipeline_mode<synchronous>, transform_indices = @transform_4, window_bounds = array<i64: 16, 1>}, {transform_indices = @transform_5, window_bounds = array<i64: 1, 16, 128>}]} {
    %c0_i32 = arith.constant 0 : i32
    %0 = arith.cmpi eq, %arg0, %c0_i32 : i32
    %c0_i32_0 = arith.constant 0 : i32
    %1 = arith.cmpi eq, %arg1, %c0_i32_0 : i32
    %2 = arith.andi %0, %1 : i1
    %c0_i32_1 = arith.constant 0 : i32
    %3 = arith.cmpi eq, %arg2, %c0_i32_1 : i32
    %4 = arith.andi %2, %3 : i1
    %5 = arith.extui %4 : i1 to i32
    %c0_i32_2 = arith.constant 0 : i32
    %6 = arith.cmpi ne, %5, %c0_i32_2 : i32
    scf.if %6 {
      %cst_19 = arith.constant 0.000000e+00 : f32
      %47 = vector.broadcast %cst_19 : f32 to vector<16x1xf32>
      %c0_20 = arith.constant 0 : index
      %c0_21 = arith.constant 0 : index
      %48 = vector.load %arg9[%c0_20, %c0_21] : memref<16x1xf32, #tpu.memory_space<vmem>>, vector<16x1xf32>
      tpu.vector_store %arg9[%c0_20, %c0_21], %47 {strides = array<i32>} : memref<16x1xf32, #tpu.memory_space<vmem>>, vector<16x1xf32>,
      %cst_22 = arith.constant 0.000000e+00 : f32
      %49 = vector.broadcast %cst_22 : f32 to vector<16x1xf32>
      %c0_23 = arith.constant 0 : index
      %c0_24 = arith.constant 0 : index
      %50 = vector.load %arg10[%c0_23, %c0_24] : memref<16x1xf32, #tpu.memory_space<vmem>>, vector<16x1xf32>
      tpu.vector_store %arg10[%c0_23, %c0_24], %49 {strides = array<i32>} : memref<16x1xf32, #tpu.memory_space<vmem>>, vector<16x1xf32>,
    } else {
    }
    %7 = tpu.iota {dimensions = array<i32: 1>} : vector<1x128xi32>
    %c128_i32 = arith.constant 128 : i32
    %8 = arith.muli %arg2, %c128_i32 : i32
    %c16_i32 = arith.constant 16 : i32
    %9 = arith.subi %c16_i32, %8 : i32
    %10 = vector.broadcast %9 : i32 to vector<1x128xi32>
    %11 = arith.cmpi slt, %7, %10 : vector<1x128xi32>
    %c0 = arith.constant 0 : index
    %c0_3 = arith.constant 0 : index
    %c0_4 = arith.constant 0 : index
    %12 = vector.load %arg3[%c0, %c0_3, %c0_4] : memref<1x8x128xbf16, #tpu.memory_space<vmem>>, vector<1x8x128xbf16>
    %13 = vector.shape_cast %12 : vector<1x8x128xbf16> to vector<8x128xbf16>
    %c0_5 = arith.constant 0 : index
    %c0_6 = arith.constant 0 : index
    %c0_7 = arith.constant 0 : index
    %14 = vector.load %arg4[%c0_5, %c0_6, %c0_7] : memref<1x8x128xbf16, #tpu.memory_space<vmem>>, vector<1x8x128xbf16>
    %15 = vector.shape_cast %14 : vector<1x8x128xbf16> to vector<8x128xbf16>
    %16 = tpu.concatenate %13, %15 in 1 : vector<8x128xbf16>, vector<8x128xbf16> -> vector<8x256xbf16>
    %17 = vector.extract_strided_slice %16 {offsets = [0, 0], sizes = [4, 256], strides = [1, 1]} : vector<8x256xbf16> to vector<4x256xbf16>
    %c0_8 = arith.constant 0 : index
    %c0_9 = arith.constant 0 : index
    %18 = vector.load %arg5[%c0_8, %c0_9] : memref<16x20xbf16, #tpu.memory_space<vmem>>, vector<8x20xbf16>
    %19 = vector.extract_strided_slice %17 {offsets = [0, 0], sizes = [4, 128], strides = [1, 1]} : vector<4x256xbf16> to vector<4x128xbf16>
    %20 = vector.extract_strided_slice %17 {offsets = [0, 1], sizes = [4, 128], strides = [1, 1]} : vector<4x256xbf16> to vector<4x128xbf16>
    %21 = vector.extract_strided_slice %17 {offsets = [0, 2], sizes = [4, 128], strides = [1, 1]} : vector<4x256xbf16> to vector<4x128xbf16>
    %22 = vector.extract_strided_slice %17 {offsets = [0, 3], sizes = [4, 128], strides = [1, 1]} : vector<4x256xbf16> to vector<4x128xbf16>
    %23 = vector.extract_strided_slice %17 {offsets = [0, 4], sizes = [4, 128], strides = [1, 1]} : vector<4x256xbf16> to vector<4x128xbf16>
    %24 = tpu.concatenate %19, %20, %21, %22, %23 in 0 : vector<4x128xbf16>, vector<4x128xbf16>, vector<4x128xbf16>, vector<4x128xbf16>, vector<4x128xbf16> -> vector<20x128xbf16>
    %cst = arith.constant dense<0.000000e+00> : vector<8x128xf32>
    %25 = tpu.matmul %18, %24, %cst {dimension_numbers = #tpu.dot_dimension_numbers<[1], [0], [0], [1], [0, 0, 1, 1], [], []>} : vector<8x20xbf16>, vector<20x128xbf16>, vector<8x128xf32> -> vector<8x128xf32>
    %c0_i32_10 = arith.constant 0 : i32
    %26 = arith.cmpi eq, %arg0, %c0_i32_10 : i32
    %27 = arith.extui %26 : i1 to i32
    %c0_i32_11 = arith.constant 0 : i32
    %28 = arith.cmpi ne, %27, %c0_i32_11 : i32
    scf.if %28 {
      %cst_19 = arith.constant 0.000000e+00 : f32
      %47 = vector.shape_cast %11 : vector<1x128xi1> to vector<1x128xi1>
      %48 = vector.broadcast %47 : vector<1x128xi1> to vector<8x128xi1>
      %49 = vector.broadcast %cst_19 : f32 to vector<8x128xf32>
      %50 = arith.select %48, %25, %49 : vector<8x128xi1>, vector<8x128xf32>
      %c0_20 = arith.constant 0 : index
      %c0_21 = arith.constant 0 : index
      %51 = vector.load %arg9[%c0_20, %c0_21] : memref<16x1xf32, #tpu.memory_space<vmem>>, vector<8x1xf32>
      %cst_22 = arith.constant dense<0.000000e+00> : vector<8xf32>
      %52 = vector.multi_reduction <add>, %50, %cst_22 [1] : vector<8x128xf32> to vector<8xf32>
      %53 = vector.shape_cast %52 : vector<8xf32> to vector<8x1xf32>
      %54 = arith.addf %51, %53 : vector<8x1xf32>
      %c0_23 = arith.constant 0 : index
      %c0_24 = arith.constant 0 : index
      %55 = vector.load %arg9[%c0_23, %c0_24] : memref<16x1xf32, #tpu.memory_space<vmem>>, vector<8x1xf32>
      tpu.vector_store %arg9[%c0_23, %c0_24], %54 {strides = array<i32>} : memref<16x1xf32, #tpu.memory_space<vmem>>, vector<8x1xf32>,
      %c0_25 = arith.constant 0 : index
      %c0_26 = arith.constant 0 : index
      %56 = vector.load %arg10[%c0_25, %c0_26] : memref<16x1xf32, #tpu.memory_space<vmem>>, vector<8x1xf32>
      %57 = arith.mulf %50, %50 : vector<8x128xf32>
      %cst_27 = arith.constant dense<0.000000e+00> : vector<8xf32>
      %58 = vector.multi_reduction <add>, %57, %cst_27 [1] : vector<8x128xf32> to vector<8xf32>
      %59 = vector.shape_cast %58 : vector<8xf32> to vector<8x1xf32>
      %60 = arith.addf %56, %59 : vector<8x1xf32>
      %c0_28 = arith.constant 0 : index
      %c0_29 = arith.constant 0 : index
      %61 = vector.load %arg10[%c0_28, %c0_29] : memref<16x1xf32, #tpu.memory_space<vmem>>, vector<8x1xf32>
      tpu.vector_store %arg10[%c0_28, %c0_29], %60 {strides = array<i32>} : memref<16x1xf32, #tpu.memory_space<vmem>>, vector<8x1xf32>,
    } else {
    }
    %c1_i32 = arith.constant 1 : i32
    %29 = arith.cmpi eq, %arg0, %c1_i32 : i32
    %30 = arith.extui %29 : i1 to i32
    %c0_i32_12 = arith.constant 0 : i32
    %31 = arith.cmpi ne, %30, %c0_i32_12 : i32
    scf.if %31 {
      %c0_19 = arith.constant 0 : index
      %c0_20 = arith.constant 0 : index
      %47 = vector.load %arg9[%c0_19, %c0_20] : memref<16x1xf32, #tpu.memory_space<vmem>>, vector<8x1xf32>
      %cst_21 = arith.constant 3.125000e-02 : f32
      %48 = vector.broadcast %cst_21 : f32 to vector<8x1xf32>
      %49 = arith.mulf %47, %48 : vector<8x1xf32>
      %c0_22 = arith.constant 0 : index
      %c0_23 = arith.constant 0 : index
      %50 = vector.load %arg10[%c0_22, %c0_23] : memref<16x1xf32, #tpu.memory_space<vmem>>, vector<8x1xf32>
      %cst_24 = arith.constant 3.125000e-02 : f32
      %51 = vector.broadcast %cst_24 : f32 to vector<8x1xf32>
      %52 = arith.mulf %50, %51 : vector<8x1xf32>
      %53 = arith.mulf %49, %49 : vector<8x1xf32>
      %54 = arith.subf %52, %53 : vector<8x1xf32>
      %55 = vector.broadcast %49 : vector<8x1xf32> to vector<8x128xf32>
      %56 = arith.subf %25, %55 : vector<8x128xf32>
      %cst_25 = arith.constant 9.99999993E-9 : f32
      %57 = vector.broadcast %cst_25 : f32 to vector<8x1xf32>
      %58 = arith.addf %54, %57 : vector<8x1xf32>
      %59 = math.rsqrt %58 : vector<8x1xf32>
      %60 = vector.broadcast %59 : vector<8x1xf32> to vector<8x128xf32>
      %61 = arith.mulf %56, %60 : vector<8x128xf32>
      %c0_26 = arith.constant 0 : index
      %c0_27 = arith.constant 0 : index
      %62 = vector.load %arg6[%c0_26, %c0_27] : memref<16x1xf32, #tpu.memory_space<vmem>>, vector<8x1xf32>
      %63 = vector.broadcast %62 : vector<8x1xf32> to vector<8x128xf32>
      %64 = arith.mulf %61, %63 : vector<8x128xf32>
      %c0_28 = arith.constant 0 : index
      %c0_29 = arith.constant 0 : index
      %65 = vector.load %arg7[%c0_28, %c0_29] : memref<16x1xf32, #tpu.memory_space<vmem>>, vector<8x1xf32>
      %66 = vector.broadcast %65 : vector<8x1xf32> to vector<8x128xf32>
      %67 = arith.addf %64, %66 : vector<8x128xf32>
      %cst_30 = arith.constant 0.000000e+00 : f32
      %68 = vector.broadcast %cst_30 : f32 to vector<8x128xf32>
      %69 = arith.maximumf %67, %68 : vector<8x128xf32>
      %c0_31 = arith.constant 0 : index
      %c0_32 = arith.constant 0 : index
      %c0_33 = arith.constant 0 : index
      %70 = vector.load %arg8[%c0_31, %c0_32, %c0_33] : memref<1x16x128xf32, #tpu.memory_space<vmem>>, vector<1x8x128xf32>
      %71 = vector.shape_cast %70 : vector<1x8x128xf32> to vector<8x128xf32>
      %72 = vector.shape_cast %69 : vector<8x128xf32> to vector<1x8x128xf32>
      tpu.vector_store %arg8[%c0_31, %c0_32, %c0_33], %72 {strides = array<i32>} : memref<1x16x128xf32, #tpu.memory_space<vmem>>, vector<1x8x128xf32>,
    } else {
    }
    %32 = vector.extract_strided_slice %16 {offsets = [4, 0], sizes = [4, 256], strides = [1, 1]} : vector<8x256xbf16> to vector<4x256xbf16>
    %c8 = arith.constant 8 : index
    %c0_13 = arith.constant 0 : index
    %33 = vector.load %arg5[%c8, %c0_13] : memref<16x20xbf16, #tpu.memory_space<vmem>>, vector<8x20xbf16>
    %34 = vector.extract_strided_slice %32 {offsets = [0, 0], sizes = [4, 128], strides = [1, 1]} : vector<4x256xbf16> to vector<4x128xbf16>
    %35 = vector.extract_strided_slice %32 {offsets = [0, 1], sizes = [4, 128], strides = [1, 1]} : vector<4x256xbf16> to vector<4x128xbf16>
    %36 = vector.extract_strided_slice %32 {offsets = [0, 2], sizes = [4, 128], strides = [1, 1]} : vector<4x256xbf16> to vector<4x128xbf16>
    %37 = vector.extract_strided_slice %32 {offsets = [0, 3], sizes = [4, 128], strides = [1, 1]} : vector<4x256xbf16> to vector<4x128xbf16>
    %38 = vector.extract_strided_slice %32 {offsets = [0, 4], sizes = [4, 128], strides = [1, 1]} : vector<4x256xbf16> to vector<4x128xbf16>
    %39 = tpu.concatenate %34, %35, %36, %37, %38 in 0 : vector<4x128xbf16>, vector<4x128xbf16>, vector<4x128xbf16>, vector<4x128xbf16>, vector<4x128xbf16> -> vector<20x128xbf16>
    %cst_14 = arith.constant dense<0.000000e+00> : vector<8x128xf32>
    %40 = tpu.matmul %33, %39, %cst_14 {dimension_numbers = #tpu.dot_dimension_numbers<[1], [0], [0], [1], [0, 0, 1, 1], [], []>} : vector<8x20xbf16>, vector<20x128xbf16>, vector<8x128xf32> -> vector<8x128xf32>
    %c0_i32_15 = arith.constant 0 : i32
    %41 = arith.cmpi eq, %arg0, %c0_i32_15 : i32
    %42 = arith.extui %41 : i1 to i32
    %c0_i32_16 = arith.constant 0 : i32
    %43 = arith.cmpi ne, %42, %c0_i32_16 : i32
    scf.if %43 {
      %cst_19 = arith.constant 0.000000e+00 : f32
      %47 = vector.shape_cast %11 : vector<1x128xi1> to vector<1x128xi1>
      %48 = vector.broadcast %47 : vector<1x128xi1> to vector<8x128xi1>
      %49 = vector.broadcast %cst_19 : f32 to vector<8x128xf32>
      %50 = arith.select %48, %40, %49 : vector<8x128xi1>, vector<8x128xf32>
      %c8_20 = arith.constant 8 : index
      %c0_21 = arith.constant 0 : index
      %51 = vector.load %arg9[%c8_20, %c0_21] : memref<16x1xf32, #tpu.memory_space<vmem>>, vector<8x1xf32>
      %cst_22 = arith.constant dense<0.000000e+00> : vector<8xf32>
      %52 = vector.multi_reduction <add>, %50, %cst_22 [1] : vector<8x128xf32> to vector<8xf32>
      %53 = vector.shape_cast %52 : vector<8xf32> to vector<8x1xf32>
      %54 = arith.addf %51, %53 : vector<8x1xf32>
      %c8_23 = arith.constant 8 : index
      %c0_24 = arith.constant 0 : index
      %55 = vector.load %arg9[%c8_23, %c0_24] : memref<16x1xf32, #tpu.memory_space<vmem>>, vector<8x1xf32>
      tpu.vector_store %arg9[%c8_23, %c0_24], %54 {strides = array<i32>} : memref<16x1xf32, #tpu.memory_space<vmem>>, vector<8x1xf32>,
      %c8_25 = arith.constant 8 : index
      %c0_26 = arith.constant 0 : index
      %56 = vector.load %arg10[%c8_25, %c0_26] : memref<16x1xf32, #tpu.memory_space<vmem>>, vector<8x1xf32>
      %57 = arith.mulf %50, %50 : vector<8x128xf32>
      %cst_27 = arith.constant dense<0.000000e+00> : vector<8xf32>
      %58 = vector.multi_reduction <add>, %57, %cst_27 [1] : vector<8x128xf32> to vector<8xf32>
      %59 = vector.shape_cast %58 : vector<8xf32> to vector<8x1xf32>
      %60 = arith.addf %56, %59 : vector<8x1xf32>
      %c8_28 = arith.constant 8 : index
      %c0_29 = arith.constant 0 : index
      %61 = vector.load %arg10[%c8_28, %c0_29] : memref<16x1xf32, #tpu.memory_space<vmem>>, vector<8x1xf32>
      tpu.vector_store %arg10[%c8_28, %c0_29], %60 {strides = array<i32>} : memref<16x1xf32, #tpu.memory_space<vmem>>, vector<8x1xf32>,
    } else {
    }
    %c1_i32_17 = arith.constant 1 : i32
    %44 = arith.cmpi eq, %arg0, %c1_i32_17 : i32
    %45 = arith.extui %44 : i1 to i32
    %c0_i32_18 = arith.constant 0 : i32
    %46 = arith.cmpi ne, %45, %c0_i32_18 : i32
    scf.if %46 {
      %c8_19 = arith.constant 8 : index
      %c0_20 = arith.constant 0 : index
      %47 = vector.load %arg9[%c8_19, %c0_20] : memref<16x1xf32, #tpu.memory_space<vmem>>, vector<8x1xf32>
      %cst_21 = arith.constant 3.125000e-02 : f32
      %48 = vector.broadcast %cst_21 : f32 to vector<8x1xf32>
      %49 = arith.mulf %47, %48 : vector<8x1xf32>
      %c8_22 = arith.constant 8 : index
      %c0_23 = arith.constant 0 : index
      %50 = vector.load %arg10[%c8_22, %c0_23] : memref<16x1xf32, #tpu.memory_space<vmem>>, vector<8x1xf32>
      %cst_24 = arith.constant 3.125000e-02 : f32
      %51 = vector.broadcast %cst_24 : f32 to vector<8x1xf32>
      %52 = arith.mulf %50, %51 : vector<8x1xf32>
      %53 = arith.mulf %49, %49 : vector<8x1xf32>
      %54 = arith.subf %52, %53 : vector<8x1xf32>
      %55 = vector.broadcast %49 : vector<8x1xf32> to vector<8x128xf32>
      %56 = arith.subf %40, %55 : vector<8x128xf32>
      %cst_25 = arith.constant 9.99999993E-9 : f32
      %57 = vector.broadcast %cst_25 : f32 to vector<8x1xf32>
      %58 = arith.addf %54, %57 : vector<8x1xf32>
      %59 = math.rsqrt %58 : vector<8x1xf32>
      %60 = vector.broadcast %59 : vector<8x1xf32> to vector<8x128xf32>
      %61 = arith.mulf %56, %60 : vector<8x128xf32>
      %c8_26 = arith.constant 8 : index
      %c0_27 = arith.constant 0 : index
      %62 = vector.load %arg6[%c8_26, %c0_27] : memref<16x1xf32, #tpu.memory_space<vmem>>, vector<8x1xf32>
      %63 = vector.broadcast %62 : vector<8x1xf32> to vector<8x128xf32>
      %64 = arith.mulf %61, %63 : vector<8x128xf32>
      %c8_28 = arith.constant 8 : index
      %c0_29 = arith.constant 0 : index
      %65 = vector.load %arg7[%c8_28, %c0_29] : memref<16x1xf32, #tpu.memory_space<vmem>>, vector<8x1xf32>
      %66 = vector.broadcast %65 : vector<8x1xf32> to vector<8x128xf32>
      %67 = arith.addf %64, %66 : vector<8x128xf32>
      %cst_30 = arith.constant 0.000000e+00 : f32
      %68 = vector.broadcast %cst_30 : f32 to vector<8x128xf32>
      %69 = arith.maximumf %67, %68 : vector<8x128xf32>
      %c0_31 = arith.constant 0 : index
      %c8_32 = arith.constant 8 : index
      %c0_33 = arith.constant 0 : index
      %70 = vector.load %arg8[%c0_31, %c8_32, %c0_33] : memref<1x16x128xf32, #tpu.memory_space<vmem>>, vector<1x8x128xf32>
      %71 = vector.shape_cast %70 : vector<1x8x128xf32> to vector<8x128xf32>
      %72 = vector.shape_cast %69 : vector<8x128xf32> to vector<1x8x128xf32>
      tpu.vector_store %arg8[%c0_31, %c8_32, %c0_33], %72 {strides = array<i32>} : memref<1x16x128xf32, #tpu.memory_space<vmem>>, vector<1x8x128xf32>,
    } else {
    }
    return
  }
  func.func @transform_0(%arg0: i32, %arg1: i32, %arg2: i32) -> (i32, i32, i32) {
    %c0_i32 = arith.constant 0 : i32
    %c0_i32_0 = arith.constant 0 : i32
    return %arg1, %c0_i32, %arg2 : i32, i32, i32
  }
  func.func @transform_1(%arg0: i32, %arg1: i32, %arg2: i32) -> (i32, i32, i32) {
    %c1_i32 = arith.constant 1 : i32
    %0 = arith.addi %arg2, %c1_i32 : i32
    %c1_i32_0 = arith.constant 1 : i32
    %1 = arith.muli %0, %c1_i32_0 : i32
    %c0_i32 = arith.constant 0 : i32
    %c0_i32_1 = arith.constant 0 : i32
    return %arg1, %c0_i32, %1 : i32, i32, i32
  }
  func.func @transform_2(%arg0: i32, %arg1: i32, %arg2: i32) -> (i32, i32) {
    %c0_i32 = arith.constant 0 : i32
    %c0_i32_0 = arith.constant 0 : i32
    %c0_i32_1 = arith.constant 0 : i32
    return %c0_i32, %c0_i32_0 : i32, i32
  }
  func.func @transform_3(%arg0: i32, %arg1: i32, %arg2: i32) -> (i32, i32) {
    %c0_i32 = arith.constant 0 : i32
    %c0_i32_0 = arith.constant 0 : i32
    %c0_i32_1 = arith.constant 0 : i32
    return %c0_i32, %c0_i32_0 : i32, i32
  }
  func.func @transform_4(%arg0: i32, %arg1: i32, %arg2: i32) -> (i32, i32) {
    %c0_i32 = arith.constant 0 : i32
    %c0_i32_0 = arith.constant 0 : i32
    %c0_i32_1 = arith.constant 0 : i32
    return %c0_i32, %c0_i32_0 : i32, i32
  }
  func.func @transform_5(%arg0: i32, %arg1: i32, %arg2: i32) -> (i32, i32, i32) {
    %0 = arith.muli %arg1, %arg0 : i32
    %1 = arith.muli %arg2, %arg0 : i32
    %c0_i32 = arith.constant 0 : i32
    %c0_i32_0 = arith.constant 0 : i32
    return %0, %c0_i32, %1 : i32, i32, i32
  }
}

</mosaic_0001>

<llo_original>
// kernel: tpu_custom_call.1
$region0: #{tpu_custom_call.1}
  #allocation0 [shape = 'u32[]', space=smem, size = 0x4, offset = 0x4, fixed_abs, tag = 'smem constant byte address 0x4 - core index']
  #allocation1 [shape = 'u32[144,128]{1,0:T(1,128)}', space=vmem, size = 0x12000, scoped, tag = 'internal scratch']
  #allocation2 [shape = 'f32[16,1]{1,0:T(8,128)}', space=vmem, size = 0x2000, scoped, tag = 'scratch operand']
  #allocation3 [shape = 'f32[16,1]{1,0:T(8,128)}', space=vmem, size = 0x2000, scoped, tag = 'scratch operand']
  %s0 = inlined_call_operand.vmem [shape: bf16[2,8,256], index: 0, kind: input, shape index: {}]
  %s1 = inlined_call_operand.vmem [shape: bf16[2,8,256], index: 1, kind: input, shape index: {}]
  %s2 = inlined_call_operand.vmem [shape: bf16[16,20], index: 2, kind: input, shape index: {}]
  %s3 = inlined_call_operand.vmem [shape: f32[16,1], index: 3, kind: input, shape index: {}]
  %s4 = inlined_call_operand.vmem [shape: f32[16,1], index: 4, kind: input, shape index: {}]
  %s5 = inlined_call_operand.hbm [shape: f32[2,16,16], index: 5, kind: output, shape index: {}]
  %s6 = sld [smem:[#allocation0]]
  $region73: #{tpu_custom_call.1} parent=0
    _
  %s8 = ssub.s32 1, %s6
  %s9 = scalar_select 0, %s8, %s6
  $region1: #{tpu_custom_call.1} parent=0
    #allocation4 [shape = 'u8[16384]{0}', space=vmem, size = 0x4000, scoped, tag = 'output window, operand 0']
    #allocation5 [shape = 's32[2]{0}', space=sflag, size = 0x8, scoped, tag = 'scoped memory for tpu_custom_call.1']
    %10 = vsyncpa [#allocation5], 0
    %s11 = scalar_lea.sflag [#allocation5], 1
    %12 = vsyncpa %s11, 0
    loop: start=0, step=1, limit=6
    $region2: #{tpu_custom_call.1} parent=1 // loop_pre_header
      _
    $region3: #{tpu_custom_call.1} parent=1 // loop_header
      %s14 = sphi 0, %s18
      %p15 = scmp.ge.s32.totalorder %s14, 6
      %s21 = sphi 0, %s40
      %s22 = sphi 0, %s36
      %s23 = sphi 0, %s32
      %s24 = sphi 0, %s21
      %s25 = sphi 0, %s22
      %s26 = sphi 0, %s23
      %s27 = sphi 0, %s24
      %s28 = sphi 0, %s25
      %s29 = sphi 0, %s26
      %s45 = sphi 0, %s47
      %s48 = sphi 0, %s45
      %s49 = sphi 0, %s48
      %s65 = sphi 0, %s49
      %s75 = sphi 0, %s77
      %s78 = sphi 0, %s75
      %s79 = sphi 0, %s78
      %s95 = sphi 0, %s79
      %s99 = sphi 0, %s99
      %s101 = sphi 0, %s99
      %s102 = sphi 0, %s101
      %s116 = sphi 0, %s102
      %s120 = sphi 0, %s120
      %s122 = sphi 0, %s120
      %s123 = sphi 0, %s122
      %s137 = sphi 0, %s123
      %s141 = sphi 0, %s141
      %s143 = sphi 0, %s141
      %s144 = sphi 0, %s143
      %s158 = sphi 0, %s144
      %s170 = sphi 0, %s172
      %s173 = sphi 0, %s170
      %s174 = sphi 0, %s173
      %s190 = sphi 0, %s174
    $region4: #{tpu_custom_call.1} parent=1 // loop_header_branch
      %17 = sbr.rel (%p15) target = $region8
    $region5: #{tpu_custom_call.1} parent=1 // loop_body
      %s19 = ssub.s32 %s14, 1
      %s20 = ssub.s32 %s14, 2
      %s30 = sadd.s32 1, %s23
      %p31 = scmp.ge.s32.totalorder %s30, 1
      %s32 = scalar_select %p31, 0, %s30
      %s33 = sadd.s32 1, %s22
      %s34 = scalar_select %p31, %s33, %s22
      %p35 = scmp.ge.s32.totalorder %s34, 2
      %s36 = scalar_select %p35, 0, %s34
      %s37 = sadd.s32 1, %s21
      %s38 = scalar_select %p35, %s37, %s21
      %p39 = scmp.ge.s32.totalorder %s38, 2
      %s40 = scalar_select %p39, 0, %s38
      %s41 = ssub.s32 %s22, %s36
      %s42 = ssub.s32 %s23, %s32
      %s43 = sor.u32 %s41, %s42
      %p44 = scmp.eq.s32.totalorder %s43, 0
      %s46 = sadd.s32 %s45, 1
      %s47 = scalar_select %p44, %s45, %s46
      %p50 = pneg %p44
      %p51 = scmp.eq.s32.totalorder %s14, 3
      %p52 = por %p50, %p51
      %p53 = scmp.ne.s32.totalorder %s45, %s48
      %p54 = scmp.eq.s32.totalorder %s14, 0
      %p55 = por %p53, %p54
      %p56 = scmp.ne.s32.totalorder %s45, %s48
      %p57 = scmp.eq.s32.totalorder %s19, 3
      %p58 = por %p56, %p57
      %p59 = scmp.ne.s32.totalorder %s48, %s49
      %p60 = scmp.eq.s32.totalorder %s19, 0
      %p61 = por %p59, %p60
      %p62 = scmp.ne.s32.totalorder %s48, %s49
      %p63 = scmp.eq.s32.totalorder %s20, 3
      %p64 = por %p62, %p63
      %p66 = scmp.ne.s32.totalorder %s49, %s65
      %p67 = scmp.eq.s32.totalorder %s20, 0
      %p68 = por %p66, %p67
      %s69 = sadd.s32 %s23, 1
      %s70 = sadd.s32 %s32, 1
      %s71 = ssub.s32 %s22, %s36
      %s72 = ssub.s32 %s69, %s70
      %s73 = sor.u32 %s71, %s72
      %p74 = scmp.eq.s32.totalorder %s73, 0
      %s76 = sadd.s32 %s75, 1
      %s77 = scalar_select %p74, %s75, %s76
      %p80 = pneg %p74
      %p81 = scmp.eq.s32.totalorder %s14, 3
      %p82 = por %p80, %p81
      %p83 = scmp.ne.s32.totalorder %s75, %s78
      %p84 = scmp.eq.s32.totalorder %s14, 0
      %p85 = por %p83, %p84
      %p86 = scmp.ne.s32.totalorder %s75, %s78
      %p87 = scmp.eq.s32.totalorder %s19, 3
      %p88 = por %p86, %p87
      %p89 = scmp.ne.s32.totalorder %s78, %s79
      %p90 = scmp.eq.s32.totalorder %s19, 0
      %p91 = por %p89, %p90
      %p92 = scmp.ne.s32.totalorder %s78, %s79
      %p93 = scmp.eq.s32.totalorder %s20, 3
      %p94 = por %p92, %p93
      %p96 = scmp.ne.s32.totalorder %s79, %s95
      %p97 = scmp.eq.s32.totalorder %s20, 0
      %p98 = por %p96, %p97
      %s100 = sadd.s32 %s99, 1
      %p103 = scmp.eq.s32.totalorder %s14, 3
      %p104 = scmp.ne.s32.totalorder %s99, %s101
      %p105 = scmp.eq.s32.totalorder %s14, 0
      %p106 = por %p104, %p105
      %p107 = scmp.ne.s32.totalorder %s99, %s101
      %p108 = scmp.eq.s32.totalorder %s19, 3
      %p109 = por %p107, %p108
      %p110 = scmp.ne.s32.totalorder %s101, %s102
      %p111 = scmp.eq.s32.totalorder %s19, 0
      %p112 = por %p110, %p111
      %p113 = scmp.ne.s32.totalorder %s101, %s102
      %p114 = scmp.eq.s32.totalorder %s20, 3
      %p115 = por %p113, %p114
      %p117 = scmp.ne.s32.totalorder %s102, %s116
      %p118 = scmp.eq.s32.totalorder %s20, 0
      %p119 = por %p117, %p118
      %s121 = sadd.s32 %s120, 1
      %p124 = scmp.eq.s32.totalorder %s14, 3
      %p125 = scmp.ne.s32.totalorder %s120, %s122
      %p126 = scmp.eq.s32.totalorder %s14, 0
      %p127 = por %p125, %p126
      %p128 = scmp.ne.s32.totalorder %s120, %s122
      %p129 = scmp.eq.s32.totalorder %s19, 3
      %p130 = por %p128, %p129
      %p131 = scmp.ne.s32.totalorder %s122, %s123
      %p132 = scmp.eq.s32.totalorder %s19, 0
      %p133 = por %p131, %p132
      %p134 = scmp.ne.s32.totalorder %s122, %s123
      %p135 = scmp.eq.s32.totalorder %s20, 3
      %p136 = por %p134, %p135
      %p138 = scmp.ne.s32.totalorder %s123, %s137
      %p139 = scmp.eq.s32.totalorder %s20, 0
      %p140 = por %p138, %p139
      %s142 = sadd.s32 %s141, 1
      %p145 = scmp.eq.s32.totalorder %s14, 3
      %p146 = scmp.ne.s32.totalorder %s141, %s143
      %p147 = scmp.eq.s32.totalorder %s14, 0
      %p148 = por %p146, %p147
      %p149 = scmp.ne.s32.totalorder %s141, %s143
      %p150 = scmp.eq.s32.totalorder %s19, 3
      %p151 = por %p149, %p150
      %p152 = scmp.ne.s32.totalorder %s143, %s144
      %p153 = scmp.eq.s32.totalorder %s19, 0
      %p154 = por %p152, %p153
      %p155 = scmp.ne.s32.totalorder %s143, %s144
      %p156 = scmp.eq.s32.totalorder %s20, 3
      %p157 = por %p155, %p156
      %p159 = scmp.ne.s32.totalorder %s144, %s158
      %p160 = scmp.eq.s32.totalorder %s20, 0
      %p161 = por %p159, %p160
      %s162 = smul.u32 %s22, %s21
      %s163 = smul.u32 %s23, %s21
      %s164 = smul.u32 %s36, %s40
      %s165 = smul.u32 %s32, %s40
      %s166 = ssub.s32 %s162, %s164
      %s167 = ssub.s32 %s163, %s165
      %s168 = sor.u32 %s166, %s167
      %p169 = scmp.eq.s32.totalorder %s168, 0
      %s171 = sadd.s32 %s170, 1
      %s172 = scalar_select %p169, %s170, %s171
      %p175 = pneg %p169
      %p176 = scmp.eq.s32.totalorder %s14, 3
      %p177 = por %p175, %p176
      %p178 = scmp.ne.s32.totalorder %s170, %s173
      %p179 = scmp.eq.s32.totalorder %s14, 0
      %p180 = por %p178, %p179
      %p181 = scmp.ne.s32.totalorder %s170, %s173
      %p182 = scmp.eq.s32.totalorder %s19, 3
      %p183 = por %p181, %p182
      %p184 = scmp.ne.s32.totalorder %s173, %s174
      %p185 = scmp.eq.s32.totalorder %s19, 0
      %p186 = por %p184, %p185
      %p187 = scmp.ne.s32.totalorder %s173, %s174
      %p188 = scmp.eq.s32.totalorder %s20, 3
      %p189 = por %p187, %p188
      %p191 = scmp.ne.s32.totalorder %s174, %s190
      %p192 = scmp.eq.s32.totalorder %s20, 0
      %p193 = por %p191, %p192
      %p194 = scmp.le.s32.totalorder 1, %s14
      %p195 = scmp.lt.s32.totalorder %s14, 5
      %p196 = pnand %p194, %p195
      %p197 = pneg %p196
      // Predicated region
      $region9: #{tpu_custom_call.1} parent=5 // pred_check
        _
      $region10: #{tpu_custom_call.1} parent=5 // pred_check_branch
        %199 = sbr.rel (%p196) target = $region12
      $region11: #{tpu_custom_call.1} parent=5 // pred_region
        %s200 = ssub.s32 %s14, 1
        // Predicated region
        $region13: #{tpu_custom_call.1} parent=11 // pred_check
          %p201 = pneg %p112
        $region14: #{tpu_custom_call.1} parent=11 // pred_check_branch
          %203 = sbr.rel (%p201) target = $region16
        $region15: #{tpu_custom_call.1} parent=11 // pred_region
          _
        $region16: #{tpu_custom_call.1} parent=11 // pred_fallthru
          _
        // Predicated region
        $region17: #{tpu_custom_call.1} parent=11 // pred_check
          %p204 = pneg %p133
        $region18: #{tpu_custom_call.1} parent=11 // pred_check_branch
          %206 = sbr.rel (%p204) target = $region20
        $region19: #{tpu_custom_call.1} parent=11 // pred_region
          _
        $region20: #{tpu_custom_call.1} parent=11 // pred_fallthru
          _
        // Predicated region
        $region21: #{tpu_custom_call.1} parent=11 // pred_check
          %p207 = pneg %p154
        $region22: #{tpu_custom_call.1} parent=11 // pred_check_branch
          %209 = sbr.rel (%p207) target = $region24
        $region23: #{tpu_custom_call.1} parent=11 // pred_region
          _
        $region24: #{tpu_custom_call.1} parent=11 // pred_fallthru
          _
      $region12: #{tpu_custom_call.1} parent=5 // pred_fallthru
        _
      %p210 = scmp.lt.s32.totalorder %s14, 4
      // Predicated region
      $region25: #{tpu_custom_call.1} parent=5 // pred_check
        %p211 = pneg %p210
      $region26: #{tpu_custom_call.1} parent=5 // pred_check_branch
        %213 = sbr.rel (%p211) target = $region28
      $region27: #{tpu_custom_call.1} parent=5 // pred_region
        // Predicated region
        $region29: #{tpu_custom_call.1} parent=27 // pred_check
          %p214 = pneg %p55
        $region30: #{tpu_custom_call.1} parent=27 // pred_check_branch
          %216 = sbr.rel (%p214) target = $region32
        $region31: #{tpu_custom_call.1} parent=27 // pred_region
          %p217 = scmp.lt.s32.totalorder %s22, 1
          %s218 = scalar_select %p217, %s22, 1
          %p219 = scmp.lt.s32.totalorder %s23, 1
          %s220 = scalar_select %p219, %s23, 1
          %s221 = smul.addr %s218, 2
          %s222 = sadd.s32 %s220, %s221
          %s223 = smul.addr %s222, 4
          %s224 = scalar_lea.vmem %s0, %s223
        $region32: #{tpu_custom_call.1} parent=27 // pred_fallthru
          _
        // Predicated region
        $region33: #{tpu_custom_call.1} parent=27 // pred_check
          %p225 = pneg %p85
        $region34: #{tpu_custom_call.1} parent=27 // pred_check_branch
          %227 = sbr.rel (%p225) target = $region36
        $region35: #{tpu_custom_call.1} parent=27 // pred_region
          %s228 = sadd.s32 %s23, 1
          %p229 = scmp.lt.s32.totalorder %s22, 1
          %s230 = scalar_select %p229, %s22, 1
          %p231 = scmp.lt.s32.totalorder %s228, 1
          %s232 = scalar_select %p231, %s228, 1
          %s233 = smul.addr %s230, 2
          %s234 = sadd.s32 %s232, %s233
          %s235 = smul.addr %s234, 4
          %s236 = scalar_lea.vmem %s1, %s235
          %s237 = sadd.s32 %s23, 1
        $region36: #{tpu_custom_call.1} parent=27 // pred_fallthru
          _
      $region28: #{tpu_custom_call.1} parent=5 // pred_fallthru
        _
      %p238 = scmp.le.s32.totalorder 1, %s14
      %p239 = scmp.lt.s32.totalorder %s14, 5
      %p240 = pnand %p238, %p239
      %p241 = pneg %p240
      // Predicated region
      $region37: #{tpu_custom_call.1} parent=5 // pred_check
        _
      $region38: #{tpu_custom_call.1} parent=5 // pred_check_branch
        %243 = sbr.rel (%p240) target = $region40
      $region39: #{tpu_custom_call.1} parent=5 // pred_region
        %s244 = ssub.s32 %s14, 1
        %p245 = scmp.lt.s32.totalorder %s25, 1
        %s246 = scalar_select %p245, %s25, 1
        %p247 = scmp.lt.s32.totalorder %s26, 1
        %s248 = scalar_select %p247, %s26, 1
        %s249 = smul.addr %s246, 2
        %s250 = sadd.s32 %s248, %s249
        %s251 = smul.addr %s250, 4
        %s252 = scalar_lea.vmem %s0, %s251
        %p253 = pneg %p61
        %p254 = pneg %p58
        %s255 = sadd.s32 %s26, 1
        %p256 = scmp.lt.s32.totalorder %s25, 1
        %s257 = scalar_select %p256, %s25, 1
        %p258 = scmp.lt.s32.totalorder %s255, 1
        %s259 = scalar_select %p258, %s255, 1
        %s260 = smul.addr %s257, 2
        %s261 = sadd.s32 %s259, %s260
        %s262 = smul.addr %s261, 4
        %s263 = scalar_lea.vmem %s1, %s262
        %p264 = pneg %p91
        %p265 = pneg %p88
        %p266 = pneg %p112
        %p267 = pneg %p109
        %p268 = pneg %p133
        %p269 = pneg %p130
        %p270 = pneg %p154
        %p271 = pneg %p151
        %p272 = pneg %p186
        %p273 = pneg %p183
        %s274 = sand.u32 %s173, 1
        %s275 = scalar_lea.sflag [#allocation5], %s274
        %s276 = sand.u32 %s173, 1
        %s277 = smul.addr %s276, 16
        %s278 = scalar_lea.vmem [#allocation4], %s277
        %p279 = scmp.lt.s32.totalorder %s25, 1
        %s280 = scalar_select %p279, %s25, 1
        %p281 = scmp.lt.s32.totalorder %s26, 1
        %s282 = scalar_select %p281, %s26, 1
        %s283 = smul.addr %s280, 2
        %s284 = sadd.s32 %s282, %s283
        %s285 = smul.addr %s284, 4
        %s286 = scalar_lea.vmem %s0, %s285
        %s287 = sadd.s32 %s26, 1
        %p288 = scmp.lt.s32.totalorder %s25, 1
        %s289 = scalar_select %p288, %s25, 1
        %p290 = scmp.lt.s32.totalorder %s287, 1
        %s291 = scalar_select %p290, %s287, 1
        %s292 = smul.addr %s289, 2
        %s293 = sadd.s32 %s291, %s292
        %s294 = smul.addr %s293, 4
        %s295 = scalar_lea.vmem %s1, %s294
        %s296 = sadd.s32 %s26, 1
        %s297 = smul.u32 %s25, %s24
        %s298 = smul.u32 %s26, %s24
        %p300 = scmp.eq.s32.totalorder %s24, 0
        %p301 = scmp.eq.s32.totalorder %s25, 0
        %p302 = pnand %p300, %p301
        %p303 = pneg %p302
        %p304 = scmp.eq.s32.totalorder %s26, 0
        %p305 = pnand %p303, %p304
        %p306 = pneg %p305
        // Predicated region
        $region41: #{tpu_custom_call.1} parent=39 // pred_check
          _
        $region42: #{tpu_custom_call.1} parent=39 // pred_check_branch
          %308 = sbr.rel (%p305) target = $region44
        $region43: #{tpu_custom_call.1} parent=39 // pred_region
          %vm309 = vcmask 7168
          %310 = vst.msk [vmem:[#allocation2] sm:$0xff] %vm309, 0.0
          %311 = vst.msk [vmem:[#allocation2 + $0x8] sm:$0xff] %vm309, 0.0
          %312 = vst.msk [vmem:[#allocation3] sm:$0xff] %vm309, 0.0
          %313 = vst.msk [vmem:[#allocation3 + $0x8] sm:$0xff] %vm309, 0.0
        $region44: #{tpu_custom_call.1} parent=39 // pred_fallthru
          _
        %v314 = vlaneseq
        %v315 = vand.u32 %v314, 127
        %s316 = smul.u32 %s26, 128
        %s317 = ssub.s32 16, %s316
        %v318 = vstv %s317
        %vm319 = vcmp.lt.s32.totalorder %v315, %v318
        %v320 = vld [vmem:[%s286] sm:$0xf]
        %v321 = vld [vmem:[%s295] sm:$0xf]
        %v322 = vld [vmem:[%s2] sm:$0xf]
        %v325 = vrot.slane %v320, 6
        %v326 = vrot.slane %v321, 6
        %327 = vrot.lane.b32.xlu0 %v325, 127
        %v328 = vpop.permute.xlu0 %327
        %329 = vrot.lane.b32.xlu0 %v326, 127
        %v330 = vpop.permute.xlu0 %329
        %vm331 = vcmask 1039360
        %v332 = vsel %vm331, %v328, %v330
        %v333 = vrot.slane %v320, 4
        %v334 = vrot.slane %v321, 4
        %335 = vrot.lane.b32.xlu0 %v333, 126
        %v336 = vpop.permute.xlu0 %335
        %337 = vrot.lane.b32.xlu0 %v334, 126
        %v338 = vpop.permute.xlu0 %337
        %vm339 = vcmask 1031168
        %v340 = vsel %vm339, %v336, %v338
        %v341 = vrot.slane %v320, 2
        %v342 = vrot.slane %v321, 2
        %343 = vrot.lane.b32.xlu0 %v341, 125
        %v344 = vpop.permute.xlu0 %343
        %345 = vrot.lane.b32.xlu0 %v342, 125
        %v346 = vpop.permute.xlu0 %345
        %vm347 = vcmask 1022976
        %v348 = vsel %vm347, %v344, %v346
        %349 = vrot.lane.b32.xlu0 %v320, 124
        %v350 = vpop.permute.xlu0 %349
        %351 = vrot.lane.b32.xlu0 %v321, 124
        %v352 = vpop.permute.xlu0 %351
        %vm353 = vcmask 1014784
        %v354 = vsel %vm353, %v350, %v352
        %vm355 = vcmask 1041408
        %v358 = vsel %vm355, %v320, %v332
        %vm359 = vcmask 1043456
        %v361 = vsel %vm359, %v358, %v340
        %vm362 = vcmask 1045504
        %v364 = vsel %vm362, %v361, %v348
        %vm366 = vcmask 162816
        %v368 = vsel %vm366, %v322, 0
        %v371 = vsel %vm355, %v354, 0
        %373 = vmatprep.subr.bf16.mxu0 0
        %374 = vmatpush1.bf16.msra.mxu0 %v364
        %375 = vmatprep.subr.bf16.mxu0 0
        %376 = vmatpush1.bf16.msra.mxu0 %v371
        %377 = vmatprep.subr.bf16.mxu0 0
        %378 = vmatpush1.bf16.msra.mxu0 0
        %379 = vmatprep.subr.bf16.mxu0 0
        %380 = vmatpush1.bf16.msra.mxu0 0
        %381 = vmatprep.subr.bf16.mxu0 0
        %382 = vmatpush1.bf16.msra.mxu0 0
        %383 = vmatprep.subr.bf16.mxu0 0
        %384 = vmatpush1.bf16.msra.mxu0 0
        %385 = vmatprep.subr.bf16.mxu0 0
        %386 = vmatpush1.bf16.msra.mxu0 0
        %387 = vmatprep.subr.bf16.mxu0 0
        %388 = vmatpush1.bf16.msra.mxu0 0
        %389 = vmatprep.subr.bf16.mxu0 0
        %390 = vmatpush1.bf16.msra.mxu0 0
        %391 = vmatprep.subr.bf16.mxu0 0
        %392 = vmatpush1.bf16.msra.mxu0 0
        %393 = vmatprep.subr.bf16.mxu0 0
        %394 = vmatpush1.bf16.msra.mxu0 0
        %395 = vmatprep.subr.bf16.mxu0 0
        %396 = vmatpush1.bf16.msra.mxu0 0
        %397 = vmatprep.subr.bf16.mxu0 0
        %398 = vmatpush1.bf16.msra.mxu0 0
        %399 = vmatprep.subr.bf16.mxu0 0
        %400 = vmatpush1.bf16.msra.mxu0 0
        %401 = vmatprep.subr.bf16.mxu0 0
        %402 = vmatpush1.bf16.msra.mxu0 0
        %403 = vmatprep.subr.bf16.mxu0 0
        %404 = vmatpush1.bf16.msra.mxu0 0
        %405 = vmatprep.mubr.bf16.mxu0 0
        %406 = vmatmul.mubr.bf16.gmra.mrb[0].mxu0 %v368
        %v407 = vpop.f32.mrb[0].mxu0
        %v408 = vadd.f32 0.0, %v407
        %v409 = vpop.f32.mrb[0].mxu0
        %v410 = vpop.f32.mrb[0].mxu0
        %v411 = vpop.f32.mrb[0].mxu0
        %412 = vdwg.mxu0
        // Predicated region
        $region45: #{tpu_custom_call.1} parent=39 // pred_check
          %p413 = pneg %p300
        $region46: #{tpu_custom_call.1} parent=39 // pred_check_branch
          %415 = sbr.rel (%p413) target = $region48
        $region47: #{tpu_custom_call.1} parent=39 // pred_region
          %v416 = vsel %vm319, 1, 0
          %vm417 = vcmp.eq.s32.totalorder %v416, 1
          %v418 = vsel %vm417, %v408, 0.0
          %v419 = vld [vmem:[#allocation2] sm:$0xff]
          %420 = vadd.xlane.f32.xlu0 %v418
          %v421 = vpop.xlane.xlu0 %420
          %v422 = vadd.f32 %v419, %v421
          %vm423 = vcmask 7168
          %424 = vst.msk [vmem:[#allocation2] sm:$0xff] %vm423, %v422
          %v425 = vld [vmem:[#allocation3] sm:$0xff]
          %v426 = vmul.f32 %v418, %v418
          %427 = vadd.xlane.f32.xlu0 %v426
          %v428 = vpop.xlane.xlu0 %427
          %v429 = vadd.f32 %v425, %v428
          %430 = vst.msk [vmem:[#allocation3] sm:$0xff] %vm423, %v429
        $region48: #{tpu_custom_call.1} parent=39 // pred_fallthru
          _
        %p431 = scmp.eq.s32.totalorder %s24, 1
        // Predicated region
        $region49: #{tpu_custom_call.1} parent=39 // pred_check
          %p432 = pneg %p431
        $region50: #{tpu_custom_call.1} parent=39 // pred_check_branch
          %434 = sbr.rel (%p432) target = $region52
        $region51: #{tpu_custom_call.1} parent=39 // pred_region
          %v435 = vld [vmem:[#allocation2] sm:$0xff]
          %v436 = vmul.f32 %v435, 0.03125
          %v437 = vld [vmem:[#allocation3] sm:$0xff]
          %v438 = vmul.f32 %v437, 0.03125
          %v439 = vmul.f32 %v436, %v436
          %v440 = vsub.f32 %v438, %v439
          %442 = vset.pattern.permute.xlu0 0
          %443 = vperm.xlu0 %442, %v436
          %v444 = vpop.permute.xlu0 %443
          %v446 = vsub.f32 %v408, %v444
          %v447 = vadd.f32 %v440, 1e-08
          %v448 = vrsqrt.pop %v447
          %450 = vset.pattern.permute.xlu0 0
          %451 = vperm.xlu0 %450, %v448
          %v452 = vpop.permute.xlu0 %451
          %v454 = vmul.f32 %v446, %v452
          %v455 = vld [vmem:[%s3] sm:$0xff]
          %457 = vset.pattern.permute.xlu0 0
          %458 = vperm.xlu0 %457, %v455
          %v459 = vpop.permute.xlu0 %458
          %v461 = vmul.f32 %v454, %v459
          %v462 = vld [vmem:[%s4] sm:$0xff]
          %464 = vset.pattern.permute.xlu0 0
          %465 = vperm.xlu0 %464, %v462
          %v466 = vpop.permute.xlu0 %465
          %v468 = vadd.f32 %v461, %v466
          %v469 = vmax.f32 %v468, 0.0
          %470 = vst [vmem:[%s278] sm:$0xff] %v469
        $region52: #{tpu_custom_call.1} parent=39 // pred_fallthru
          _
        %v471 = vld [vmem:[%s2 + $0x4] sm:$0xf]
        %472 = vrot.lane.b32.xlu0 %v320, 127
        %v473 = vpop.permute.xlu0 %472
        %474 = vrot.lane.b32.xlu0 %v321, 127
        %v475 = vpop.permute.xlu0 %474
        %v476 = vsel %vm331, %v473, %v475
        %477 = vrot.lane.b32.xlu0 %v325, 126
        %v478 = vpop.permute.xlu0 %477
        %479 = vrot.lane.b32.xlu0 %v326, 126
        %v480 = vpop.permute.xlu0 %479
        %v481 = vsel %vm339, %v478, %v480
        %482 = vrot.lane.b32.xlu0 %v333, 125
        %v483 = vpop.permute.xlu0 %482
        %484 = vrot.lane.b32.xlu0 %v334, 125
        %v485 = vpop.permute.xlu0 %484
        %v486 = vsel %vm347, %v483, %v485
        %487 = vrot.lane.b32.xlu0 %v341, 124
        %v488 = vpop.permute.xlu0 %487
        %489 = vrot.lane.b32.xlu0 %v342, 124
        %v490 = vpop.permute.xlu0 %489
        %v491 = vsel %vm353, %v488, %v490
        %v494 = vsel %vm355, %v341, %v476
        %v496 = vsel %vm359, %v494, %v481
        %v498 = vsel %vm362, %v496, %v486
        %v501 = vsel %vm366, %v471, 0
        %v504 = vsel %vm355, %v491, 0
        %506 = vmatprep.subr.bf16.mxu0 0
        %507 = vmatpush1.bf16.msra.mxu0 %v498
        %508 = vmatprep.subr.bf16.mxu0 0
        %509 = vmatpush1.bf16.msra.mxu0 %v504
        %510 = vmatprep.subr.bf16.mxu0 0
        %511 = vmatpush1.bf16.msra.mxu0 0
        %512 = vmatprep.subr.bf16.mxu0 0
        %513 = vmatpush1.bf16.msra.mxu0 0
        %514 = vmatprep.subr.bf16.mxu0 0
        %515 = vmatpush1.bf16.msra.mxu0 0
        %516 = vmatprep.subr.bf16.mxu0 0
        %517 = vmatpush1.bf16.msra.mxu0 0
        %518 = vmatprep.subr.bf16.mxu0 0
        %519 = vmatpush1.bf16.msra.mxu0 0
        %520 = vmatprep.subr.bf16.mxu0 0
        %521 = vmatpush1.bf16.msra.mxu0 0
        %522 = vmatprep.subr.bf16.mxu0 0
        %523 = vmatpush1.bf16.msra.mxu0 0
        %524 = vmatprep.subr.bf16.mxu0 0
        %525 = vmatpush1.bf16.msra.mxu0 0
        %526 = vmatprep.subr.bf16.mxu0 0
        %527 = vmatpush1.bf16.msra.mxu0 0
        %528 = vmatprep.subr.bf16.mxu0 0
        %529 = vmatpush1.bf16.msra.mxu0 0
        %530 = vmatprep.subr.bf16.mxu0 0
        %531 = vmatpush1.bf16.msra.mxu0 0
        %532 = vmatprep.subr.bf16.mxu0 0
        %533 = vmatpush1.bf16.msra.mxu0 0
        %534 = vmatprep.subr.bf16.mxu0 0
        %535 = vmatpush1.bf16.msra.mxu0 0
        %536 = vmatprep.subr.bf16.mxu0 0
        %537 = vmatpush1.bf16.msra.mxu0 0
        %538 = vmatprep.mubr.bf16.mxu0 0
        %539 = vmatmul.mubr.bf16.gmra.mrb[0].mxu0 %v501
        %v540 = vpop.f32.mrb[0].mxu0
        %v541 = vadd.f32 0.0, %v540
        %v542 = vpop.f32.mrb[0].mxu0
        %v543 = vpop.f32.mrb[0].mxu0
        %v544 = vpop.f32.mrb[0].mxu0
        %545 = vdwg.mxu0
        // Predicated region
        $region53: #{tpu_custom_call.1} parent=39 // pred_check
          %p546 = pneg %p300
        $region54: #{tpu_custom_call.1} parent=39 // pred_check_branch
          %548 = sbr.rel (%p546) target = $region56
        $region55: #{tpu_custom_call.1} parent=39 // pred_region
          %v549 = vsel %vm319, 1, 0
          %vm550 = vcmp.eq.s32.totalorder %v549, 1
          %v551 = vsel %vm550, %v541, 0.0
          %v552 = vld [vmem:[#allocation2 + $0x8] sm:$0xff]
          %553 = vadd.xlane.f32.xlu0 %v551
          %v554 = vpop.xlane.xlu0 %553
          %v555 = vadd.f32 %v552, %v554
          %vm556 = vcmask 7168
          %557 = vst.msk [vmem:[#allocation2 + $0x8] sm:$0xff] %vm556, %v555
          %v558 = vld [vmem:[#allocation3 + $0x8] sm:$0xff]
          %v559 = vmul.f32 %v551, %v551
          %560 = vadd.xlane.f32.xlu0 %v559
          %v561 = vpop.xlane.xlu0 %560
          %v562 = vadd.f32 %v558, %v561
          %563 = vst.msk [vmem:[#allocation3 + $0x8] sm:$0xff] %vm556, %v562
        $region56: #{tpu_custom_call.1} parent=39 // pred_fallthru
          _
        // Predicated region
        $region57: #{tpu_custom_call.1} parent=39 // pred_check
          %p564 = pneg %p431
        $region58: #{tpu_custom_call.1} parent=39 // pred_check_branch
          %566 = sbr.rel (%p564) target = $region60
        $region59: #{tpu_custom_call.1} parent=39 // pred_region
          %v567 = vld [vmem:[#allocation2 + $0x8] sm:$0xff]
          %v568 = vmul.f32 %v567, 0.03125
          %v569 = vld [vmem:[#allocation3 + $0x8] sm:$0xff]
          %v570 = vmul.f32 %v569, 0.03125
          %v571 = vmul.f32 %v568, %v568
          %v572 = vsub.f32 %v570, %v571
          %574 = vset.pattern.permute.xlu0 0
          %575 = vperm.xlu0 %574, %v568
          %v576 = vpop.permute.xlu0 %575
          %v578 = vsub.f32 %v541, %v576
          %v579 = vadd.f32 %v572, 1e-08
          %v580 = vrsqrt.pop %v579
          %582 = vset.pattern.permute.xlu0 0
          %583 = vperm.xlu0 %582, %v580
          %v584 = vpop.permute.xlu0 %583
          %v586 = vmul.f32 %v578, %v584
          %v587 = vld [vmem:[%s3 + $0x8] sm:$0xff]
          %589 = vset.pattern.permute.xlu0 0
          %590 = vperm.xlu0 %589, %v587
          %v591 = vpop.permute.xlu0 %590
          %v593 = vmul.f32 %v586, %v591
          %v594 = vld [vmem:[%s4 + $0x8] sm:$0xff]
          %596 = vset.pattern.permute.xlu0 0
          %597 = vperm.xlu0 %596, %v594
          %v598 = vpop.permute.xlu0 %597
          %v600 = vadd.f32 %v593, %v598
          %v601 = vmax.f32 %v600, 0.0
          %602 = vst [vmem:[%s278 + $0x8] sm:$0xff] %v601
        $region60: #{tpu_custom_call.1} parent=39 // pred_fallthru
          _
        %s603 = sand.u32 %s173, 1
        %s604 = scalar_lea.sflag [#allocation5], %s603
        %s605 = sand.u32 %s173, 1
        %s606 = smul.addr %s605, 16
        %s607 = scalar_lea.vmem [#allocation4], %s606
        // Predicated region
        $region61: #{tpu_custom_call.1} parent=39 // pred_check
          %p608 = pneg %p183
        $region62: #{tpu_custom_call.1} parent=39 // pred_check_branch
          %610 = sbr.rel (%p608) target = $region64
        $region63: #{tpu_custom_call.1} parent=39 // pred_region
          %s611 = smul.u32 %s25, %s24
          %s612 = smul.u32 %s26, %s24
          %s614 = ssub.s32 256, 256
          %615 = vsyncadd %s604, %s614
          %s616 = smul.addr %s611, 2
          %s617 = sadd.s32 %s612, %s616
          %s618 = smul.addr %s617, 128
          %s619 = scalar_lea.hbm %s5, %s618
          %s620 = sshll.u32 %s607, 4
          %s621 = int_to_ptr.vmem [resolvable:$true] %s620
          %626 = dma.vmem_to_hbm [thread:$0]  %s621, 256, %s619, %s604, 128, 128, 8
        $region64: #{tpu_custom_call.1} parent=39 // pred_fallthru
          _
      $region40: #{tpu_custom_call.1} parent=5 // pred_fallthru
        _
      %p627 = scmp.le.s32.totalorder 2, %s14
      // Predicated region
      $region65: #{tpu_custom_call.1} parent=5 // pred_check
        %p628 = pneg %p627
      $region66: #{tpu_custom_call.1} parent=5 // pred_check_branch
        %630 = sbr.rel (%p628) target = $region68
      $region67: #{tpu_custom_call.1} parent=5 // pred_region
        %s631 = ssub.s32 %s14, 2
        // Predicated region
        $region69: #{tpu_custom_call.1} parent=67 // pred_check
          %p632 = pneg %p189
        $region70: #{tpu_custom_call.1} parent=67 // pred_check_branch
          %634 = sbr.rel (%p632) target = $region72
        $region71: #{tpu_custom_call.1} parent=67 // pred_region
          %s635 = sand.u32 %s174, 1
          %s636 = scalar_lea.sflag [#allocation5], %s635
          %s637 = sand.u32 %s174, 1
          %s638 = smul.addr %s637, 16
          %s639 = scalar_lea.vmem [#allocation4], %s638
          %640 = dma.done %s636, 256
        $region72: #{tpu_custom_call.1} parent=67 // pred_fallthru
          _
      $region68: #{tpu_custom_call.1} parent=5 // pred_fallthru
        _
    $region6: #{tpu_custom_call.1} parent=1 // loop_footer
      %s18 = sadd.s32 1, %s14
    $region7: #{tpu_custom_call.1} parent=1 // loop_footer_branch
      %13 = sbr.rel target = $region3
    $region8: #{tpu_custom_call.1} parent=1 // loop_exit
      _
    %641 = vsyncpa [#allocation5], 1
    %s642 = scalar_lea.sflag [#allocation5], 1
    %643 = vsyncpa %s642, 1

</llo_original>
